<compile_context>
chip_gen: v7x
topology: tpu7x:2x2x1
jax: 0.10.0
libtpu: 0.0.40
codegen_flags: <defaults>
</compile_context>

<pallas_src>
import functools
import math

import jax
import jax.numpy as jnp
from jax.experimental import pallas as pl
from jax.experimental.pallas import tpu as pltpu


def _softplus(x):
    # numerically stable log(1 + exp(x))
    return jnp.maximum(x, 0.0) + jnp.log1p(jnp.exp(-jnp.abs(x)))


def _round_up(a, b):
    return (a + b - 1) // b * b


def _pad2(a, rows, cols):
    if a.shape == (rows, cols):
        return a
    return jnp.pad(a, ((0, rows - a.shape[0]), (0, cols - a.shape[1])))


def _sum_all_keepdims(v):
    # (R, C) -> (1, 1) via lane reduce then sublane reduce (both well supported).
    return jnp.sum(jnp.sum(v, axis=1, keepdims=True), axis=0, keepdims=True)


# -----------------------------------------------------------------------------
# Kernel 1: reparameterized sampling of W / b  +  tiled, masked KL reduction
# -----------------------------------------------------------------------------
def _sample_kl_kernel(wmu_ref, wrho_ref, weps_ref, bmu_ref, brho_ref, beps_ref,
                      wsamp_ref, bsamp_ref, kl_ref,
                      *, true_k, true_n, prior_mu, inv_prior_cov):
    kb = pl.program_id(0)          # K-block index
    nb = pl.program_id(1)          # N-block index
    bk, bn = wmu_ref.shape

    # --- weight sample: W = mu + eps * softplus(rho) -------------------------
    w_std = _softplus(wrho_ref[...])
    wsamp_ref[...] = wmu_ref[...] + weps_ref[...] * w_std

    # --- bias sample (tiny; recomputed every kb so the output block is always
    #     valid when its (0, nb) index is revisited) ---------------------------
    b_std = _softplus(brho_ref[...])
    bsamp_ref[...] = bmu_ref[...] + beps_ref[...] * b_std

    # --- KL(q || N(prior_mu, prior_cov)) partial sums ------------------------
    # per-element term: (std^2 + (mu - pm)^2)/pc - 2*log(std); the constant
    # numel*(log(pc) - 1) and the global 0.5 factor are folded in the wrapper.
    @pl.when(jnp.logical_and(kb == 0, nb == 0))
    def _():
        kl_ref[...] = jnp.zeros_like(kl_ref)

    rows = kb * bk + jax.lax.broadcasted_iota(jnp.int32, (bk, bn), 0)
    cols = nb * bn + jax.lax.broadcasted_iota(jnp.int32, (bk, bn), 1)
    wmask = jnp.logical_and(rows < true_k, cols < true_n)
    w_std_c = jnp.maximum(w_std, 1e-30)
    dw = wmu_ref[...] - prior_mu
    w_term = (w_std_c * w_std_c + dw * dw) * inv_prior_cov - 2.0 * jnp.log(w_std_c)
    kl_ref[...] += _sum_all_keepdims(jnp.where(wmask, w_term, 0.0))

    @pl.when(kb == 0)   # add the bias contribution exactly once per N-block
    def _():
        bcols = nb * bn + jax.lax.broadcasted_iota(jnp.int32, (1, bn), 1)
        bmask = bcols < true_n
        b_std_c = jnp.maximum(b_std, 1e-30)
        db = bmu_ref[...] - prior_mu
        b_term = (b_std_c * b_std_c + db * db) * inv_prior_cov - 2.0 * jnp.log(b_std_c)
        kl_ref[...] += _sum_all_keepdims(jnp.where(bmask, b_term, 0.0))


# -----------------------------------------------------------------------------
# Kernel 2: bf16 MXU matmul + bias, accumulating directly into the f32 output
# -----------------------------------------------------------------------------
def _matmul_bias_kernel(x_ref, w_ref, b_ref, out_ref):
    k = pl.program_id(2)

    @pl.when(k == 0)
    def _():
        out_ref[...] = jnp.zeros_like(out_ref)

    out_ref[...] += jnp.dot(x_ref[...].astype(jnp.bfloat16),
                            w_ref[...].astype(jnp.bfloat16),
                            preferred_element_type=jnp.float32)

    @pl.when(k == pl.num_programs(2) - 1)
    def _():
        out_ref[...] += b_ref[...]          # (tm, tn) += (1, tn) broadcast


# -----------------------------------------------------------------------------
# Wrapper
# -----------------------------------------------------------------------------
def bayes_linear_normalq(x, weight_mus, weight_rhos, bias_mus, bias_rhos,
                         seed=0, *, prior_mu=0.0, prior_sigma=1.0,
                         return_samples=False):
    """Forward pass of BayesLinear_Normalq with sample=True.

    Returns (output, KL_loss); with return_samples=True additionally returns the
    sampled (weight, bias) for verification/debugging.
    """
    x = jnp.asarray(x, jnp.float32)
    wmu = jnp.asarray(weight_mus, jnp.float32)
    wrho = jnp.asarray(weight_rhos, jnp.float32)
    bmu = jnp.asarray(bias_mus, jnp.float32).reshape(1, -1)
    brho = jnp.asarray(bias_rhos, jnp.float32).reshape(1, -1)

    M, K = x.shape
    Kw, N = wmu.shape
    assert Kw == K, "x and weight_mus have incompatible inner dims"

    # eps drawn on host via jax.random (deterministic in `seed`); reparameterization,
    # KL and matmul all run in Pallas.
    key = jax.random.PRNGKey(seed)
    kw_key, kb_key = jax.random.split(key)
    w_eps = jax.random.normal(kw_key, (K, N), dtype=jnp.float32)
    b_eps = jax.random.normal(kb_key, (1, N), dtype=jnp.float32)

    # ---- tiling: lane-dense N, VMEM-bounded (fits v7x's 64 MiB with headroom) ----
    tm = min(_round_up(M, 8), 512)
    tn = min(_round_up(N, 128), 512)
    tk = min(_round_up(K, 128), 512)
    m_pad, n_pad, k_pad = _round_up(M, tm), _round_up(N, tn), _round_up(K, tk)
    gm, gn, gk = m_pad // tm, n_pad // tn, k_pad // tk

    x_p = _pad2(x, m_pad, k_pad)
    wmu_p = _pad2(wmu, k_pad, n_pad)
    wrho_p = _pad2(wrho, k_pad, n_pad)
    weps_p = _pad2(w_eps, k_pad, n_pad)
    bmu_p = _pad2(bmu, 1, n_pad)
    brho_p = _pad2(brho, 1, n_pad)
    beps_p = _pad2(b_eps, 1, n_pad)

    # ---- kernel 1: sampling + tiled KL (single pass over mu / rho / eps) ----
    bk = min(k_pad, 512)   # divides k_pad by construction
    bn = min(n_pad, 512)   # divides n_pad by construction
    gkb, gnb = k_pad // bk, n_pad // bn

    prior_cov = float(prior_sigma) ** 2
    samp_vmem = (8 * bk * bn + 8 * bn + 8) * 4
    w_samp, b_samp, kl_sum = pl.pallas_call(
        functools.partial(_sample_kl_kernel, true_k=K, true_n=N,
                          prior_mu=float(prior_mu),
                          inv_prior_cov=1.0 / prior_cov),
        grid=(gkb, gnb),
        in_specs=[
            pl.BlockSpec((bk, bn), lambda a, b: (a, b)),   # weight_mus
            pl.BlockSpec((bk, bn), lambda a, b: (a, b)),   # weight_rhos
            pl.BlockSpec((bk, bn), lambda a, b: (a, b)),   # weight eps
            pl.BlockSpec((1, bn), lambda a, b: (0, b)),    # bias_mus
            pl.BlockSpec((1, bn), lambda a, b: (0, b)),    # bias_rhos
            pl.BlockSpec((1, bn), lambda a, b: (0, b)),    # bias eps
        ],
        out_specs=[
            pl.BlockSpec((bk, bn), lambda a, b: (a, b)),   # W_sample
            pl.BlockSpec((1, bn), lambda a, b: (0, b)),    # b_sample
            pl.BlockSpec((1, 1), lambda a, b: (0, 0)),     # KL partial sum
        ],
        out_shape=[
            jax.ShapeDtypeStruct((k_pad, n_pad), jnp.float32),
            jax.ShapeDtypeStruct((1, n_pad), jnp.float32),
            jax.ShapeDtypeStruct((1, 1), jnp.float32),
        ],
        compiler_params=pltpu.CompilerParams(
            # KL output block is shared across the whole grid -> keep sequential.
            dimension_semantics=("arbitrary", "arbitrary"),
            vmem_limit_bytes=int(min(48 * 2**20, max(16 * 2**20, 2 * samp_vmem))),
        ),
    )(wmu_p, wrho_p, weps_p, bmu_p, brho_p, beps_p)

    numel = K * N + N
    kl = 0.5 * (kl_sum[0, 0] + numel * (math.log(prior_cov) - 1.0))

    # ---- kernel 2: tiled bf16 matmul + bias ----
    mm_vmem = (2 * (tm * tk + tk * tn + tn) + 2 * tm * tn) * 4
    out_p = pl.pallas_call(
        _matmul_bias_kernel,
        grid=(gm, gn, gk),
        in_specs=[
            pl.BlockSpec((tm, tk), lambda i, j, k: (i, k)),   # x
            pl.BlockSpec((tk, tn), lambda i, j, k: (k, j)),   # W_sample
            pl.BlockSpec((1, tn), lambda i, j, k: (0, j)),    # b_sample
        ],
        out_specs=pl.BlockSpec((tm, tn), lambda i, j, k: (i, j)),
        out_shape=jax.ShapeDtypeStruct((m_pad, n_pad), jnp.float32),
        compiler_params=pltpu.CompilerParams(
            dimension_semantics=("parallel", "parallel", "arbitrary"),
            vmem_limit_bytes=int(min(48 * 2**20, max(16 * 2**20, 2 * mm_vmem))),
        ),
    )(x_p, w_samp, b_samp)

    out = out_p[:M, :N]
    if return_samples:
        return out, kl, w_samp[:K, :N], b_samp[0, :N]
    return out, kl


if __name__ == "__main__":
    batch, input_dim, output_dim = 8, 16, 32
    prior_mu, prior_sigma = 0.05, 1.5

    key = jax.random.PRNGKey(0)
    kx, kwm, kwr, kbm, kbr = jax.random.split(key, 5)

    x = jax.random.normal(kx, (batch, input_dim), dtype=jnp.float32)
    weight_mus = jax.random.uniform(kwm, (input_dim, output_dim),
                                    minval=-0.05, maxval=0.05, dtype=jnp.float32)
    weight_rhos = jax.random.uniform(kwr, (input_dim, output_dim),
                                     minval=-2.0, maxval=-1.0, dtype=jnp.float32)
    bias_mus = jax.random.uniform(kbm, (output_dim,),
                                  minval=-0.05, maxval=0.05, dtype=jnp.float32)
    bias_rhos = jax.random.uniform(kbr, (output_dim,),
                                   minval=-2.0, maxval=-1.0, dtype=jnp.float32)

    out, kl, w_sample, b_sample = bayes_linear_normalq(
        x, weight_mus, weight_rhos, bias_mus, bias_rhos, seed=1234,
        prior_mu=prior_mu, prior_sigma=prior_sigma, return_samples=True)
    jax.block_until_ready((out, kl, w_sample, b_sample))
    assert out.shape == (batch, output_dim)

    # 1) output equals x @ W_sample + b_sample for the kernel's own sampled params
    #    (kernel uses bf16 MXU operands with f32 accumulation -> compare against the
    #     same-precision reference, and loosely against the pure-f32 reference).
    ref_bf16 = jnp.dot(x.astype(jnp.bfloat16), w_sample.astype(jnp.bfloat16),
                       preferred_element_type=jnp.float32) + b_sample[None, :]
    assert jnp.allclose(out, ref_bf16, atol=1e-3, rtol=1e-3)
    ref_f32 = jnp.dot(x, w_sample, precision=jax.lax.Precision.HIGHEST) + b_sample[None, :]
    assert jnp.allclose(out, ref_f32, atol=1e-1, rtol=1e-1)

    # 2) KL matches the PyTorch formula (deterministic in mu / rho)
    w_std = jnp.log1p(jnp.exp(weight_rhos))
    b_std = jnp.log1p(jnp.exp(bias_rhos))
    pc = prior_sigma ** 2
    ref_kl = (0.5 * jnp.sum(jnp.log(pc / w_std ** 2)) - 0.5 * w_std.size
              + 0.5 * jnp.sum(w_std ** 2 / pc)
              + 0.5 * jnp.sum((weight_mus - prior_mu) ** 2 / pc)
              + 0.5 * jnp.sum(jnp.log(pc / b_std ** 2)) - 0.5 * b_std.size
              + 0.5 * jnp.sum(b_std ** 2 / pc)
              + 0.5 * jnp.sum((bias_mus - prior_mu) ** 2 / pc))
    assert jnp.allclose(kl, ref_kl, atol=1e-2, rtol=1e-4)

    # 3) implied z-scores of the sampled weights are ~ N(0, 1)
    z = (w_sample - weight_mus) / w_std
    assert bool(jnp.all(jnp.isfinite(z)))
    assert float(jnp.abs(jnp.mean(z))) < 0.3
    assert 0.55 < float(jnp.std(z)) < 1.5

    # 4) production path (no debug outputs) is deterministic in the seed
    out2, kl2 = bayes_linear_normalq(
        x, weight_mus, weight_rhos, bias_mus, bias_rhos, seed=1234,
        prior_mu=prior_mu, prior_sigma=prior_sigma)
    jax.block_until_ready((out2, kl2))
    assert jnp.allclose(out2, out, atol=1e-5, rtol=1e-5)
    assert jnp.allclose(kl2, kl, atol=1e-5, rtol=1e-6)

    print("KERNEL_OK")
</pallas_src>

<mosaic_0001>
module attributes {stable_mosaic.version = 11 : i64} {
  func.func @_sample_kl_kernel(%arg0: i32, %arg1: i32, %arg2: memref<128x128xf32, #tpu.memory_space<vmem>>, %arg3: memref<128x128xf32, #tpu.memory_space<vmem>>, %arg4: memref<128x128xf32, #tpu.memory_space<vmem>>, %arg5: memref<1x128xf32, #tpu.memory_space<vmem>>, %arg6: memref<1x128xf32, #tpu.memory_space<vmem>>, %arg7: memref<1x128xf32, #tpu.memory_space<vmem>>, %arg8: memref<128x128xf32, #tpu.memory_space<vmem>>, %arg9: memref<1x128xf32, #tpu.memory_space<vmem>>, %arg10: memref<1x1xf32, #tpu.memory_space<vmem>>) attributes {dimension_semantics = [#tpu.dimension_semantics<arbitrary>, #tpu.dimension_semantics<arbitrary>], iteration_bounds = array<i64: 1, 1>, scalar_prefetch = 0 : i64, scratch_operands = 0 : i64, tpu.core_type = #tpu.core_type<tc>, window_params = [{transform_indices = @transform_0, window_bounds = array<i64: 128, 128>}, {transform_indices = @transform_1, window_bounds = array<i64: 128, 128>}, {transform_indices = @transform_2, window_bounds = array<i64: 128, 128>}, {transform_indices = @transform_3, window_bounds = array<i64: 1, 128>}, {transform_indices = @transform_4, window_bounds = array<i64: 1, 128>}, {transform_indices = @transform_5, window_bounds = array<i64: 1, 128>}, {transform_indices = @transform_6, window_bounds = array<i64: 128, 128>}, {transform_indices = @transform_7, window_bounds = array<i64: 1, 128>}, {pipeline_mode = #tpu.pipeline_mode<synchronous>, transform_indices = @transform_8, window_bounds = array<i64: 1, 1>}]} {
    %c0 = arith.constant 0 : index
    %c0_0 = arith.constant 0 : index
    %0 = vector.load %arg3[%c0, %c0_0] : memref<128x128xf32, #tpu.memory_space<vmem>>, vector<128x128xf32>
    %cst = arith.constant 0.000000e+00 : f32
    %1 = vector.broadcast %cst : f32 to vector<128x128xf32>
    %2 = arith.maximumf %0, %1 : vector<128x128xf32>
    %3 = math.absf %0 : vector<128x128xf32>
    %cst_1 = arith.constant 0.000000e+00 : f32
    %4 = vector.broadcast %cst_1 : f32 to vector<128x128xf32>
    %5 = arith.subf %4, %3 : vector<128x128xf32>
    %6 = math.exp %5 : vector<128x128xf32>
    %7 = math.log1p %6 : vector<128x128xf32>
    %8 = arith.addf %2, %7 : vector<128x128xf32>
    %c0_2 = arith.constant 0 : index
    %c0_3 = arith.constant 0 : index
    %9 = vector.load %arg2[%c0_2, %c0_3] : memref<128x128xf32, #tpu.memory_space<vmem>>, vector<128x128xf32>
    %c0_4 = arith.constant 0 : index
    %c0_5 = arith.constant 0 : index
    %10 = vector.load %arg4[%c0_4, %c0_5] : memref<128x128xf32, #tpu.memory_space<vmem>>, vector<128x128xf32>
    %11 = arith.mulf %10, %8 : vector<128x128xf32>
    %12 = arith.addf %9, %11 : vector<128x128xf32>
    %c0_6 = arith.constant 0 : index
    %c0_7 = arith.constant 0 : index
    %13 = vector.load %arg8[%c0_6, %c0_7] : memref<128x128xf32, #tpu.memory_space<vmem>>, vector<128x128xf32>
    tpu.vector_store %arg8[%c0_6, %c0_7], %12 {strides = array<i32>} : memref<128x128xf32, #tpu.memory_space<vmem>>, vector<128x128xf32>,
    %c0_8 = arith.constant 0 : index
    %c0_9 = arith.constant 0 : index
    %14 = vector.load %arg6[%c0_8, %c0_9] : memref<1x128xf32, #tpu.memory_space<vmem>>, vector<1x128xf32>
    %cst_10 = arith.constant 0.000000e+00 : f32
    %15 = vector.broadcast %cst_10 : f32 to vector<1x128xf32>
    %16 = arith.maximumf %14, %15 : vector<1x128xf32>
    %17 = math.absf %14 : vector<1x128xf32>
    %cst_11 = arith.constant 0.000000e+00 : f32
    %18 = vector.broadcast %cst_11 : f32 to vector<1x128xf32>
    %19 = arith.subf %18, %17 : vector<1x128xf32>
    %20 = math.exp %19 : vector<1x128xf32>
    %21 = math.log1p %20 : vector<1x128xf32>
    %22 = arith.addf %16, %21 : vector<1x128xf32>
    %c0_12 = arith.constant 0 : index
    %c0_13 = arith.constant 0 : index
    %23 = vector.load %arg5[%c0_12, %c0_13] : memref<1x128xf32, #tpu.memory_space<vmem>>, vector<1x128xf32>
    %c0_14 = arith.constant 0 : index
    %c0_15 = arith.constant 0 : index
    %24 = vector.load %arg7[%c0_14, %c0_15] : memref<1x128xf32, #tpu.memory_space<vmem>>, vector<1x128xf32>
    %25 = arith.mulf %24, %22 : vector<1x128xf32>
    %26 = arith.addf %23, %25 : vector<1x128xf32>
    %c0_16 = arith.constant 0 : index
    %c0_17 = arith.constant 0 : index
    %27 = vector.load %arg9[%c0_16, %c0_17] : memref<1x128xf32, #tpu.memory_space<vmem>>, vector<1x128xf32>
    tpu.vector_store %arg9[%c0_16, %c0_17], %26 {strides = array<i32>} : memref<1x128xf32, #tpu.memory_space<vmem>>, vector<1x128xf32>,
    %c0_i32 = arith.constant 0 : i32
    %28 = arith.cmpi eq, %arg0, %c0_i32 : i32
    %c0_i32_18 = arith.constant 0 : i32
    %29 = arith.cmpi eq, %arg1, %c0_i32_18 : i32
    %30 = arith.andi %28, %29 : i1
    %31 = arith.extui %30 : i1 to i32
    %c0_i32_19 = arith.constant 0 : i32
    %32 = arith.cmpi ne, %31, %c0_i32_19 : i32
    scf.if %32 {
      %cst_36 = arith.constant 0.000000e+00 : f32
      %72 = vector.broadcast %cst_36 : f32 to vector<1x1xf32>
      %c0_37 = arith.constant 0 : index
      %c0_38 = arith.constant 0 : index
      %73 = vector.load %arg10[%c0_37, %c0_38] : memref<1x1xf32, #tpu.memory_space<vmem>>, vector<1x1xf32>
      tpu.vector_store %arg10[%c0_37, %c0_38], %72 {strides = array<i32>} : memref<1x1xf32, #tpu.memory_space<vmem>>, vector<1x1xf32>,
    } else {
    }
    %c128_i32 = arith.constant 128 : i32
    %33 = arith.muli %arg0, %c128_i32 : i32
    %34 = tpu.iota {dimensions = array<i32: 0>} : vector<128x128xi32>
    %35 = vector.broadcast %33 : i32 to vector<128x128xi32>
    %36 = arith.addi %35, %34 : vector<128x128xi32>
    %c128_i32_20 = arith.constant 128 : i32
    %37 = arith.muli %arg1, %c128_i32_20 : i32
    %38 = tpu.iota {dimensions = array<i32: 1>} : vector<128x128xi32>
    %39 = vector.broadcast %37 : i32 to vector<128x128xi32>
    %40 = arith.addi %39, %38 : vector<128x128xi32>
    %c16_i32 = arith.constant 16 : i32
    %41 = vector.broadcast %c16_i32 : i32 to vector<128x128xi32>
    %42 = arith.cmpi slt, %36, %41 : vector<128x128xi32>
    %c32_i32 = arith.constant 32 : i32
    %43 = vector.broadcast %c32_i32 : i32 to vector<128x128xi32>
    %44 = arith.cmpi slt, %40, %43 : vector<128x128xi32>
    %45 = arith.andi %42, %44 : vector<128x128xi1>
    %cst_21 = arith.constant 1.000000e-30 : f32
    %46 = vector.broadcast %cst_21 : f32 to vector<128x128xf32>
    %47 = arith.maximumf %8, %46 : vector<128x128xf32>
    %c0_22 = arith.constant 0 : index
    %c0_23 = arith.constant 0 : index
    %48 = vector.load %arg2[%c0_22, %c0_23] : memref<128x128xf32, #tpu.memory_space<vmem>>, vector<128x128xf32>
    %cst_24 = arith.constant 5.000000e-02 : f32
    %49 = vector.broadcast %cst_24 : f32 to vector<128x128xf32>
    %50 = arith.subf %48, %49 : vector<128x128xf32>
    %51 = arith.mulf %47, %47 : vector<128x128xf32>
    %52 = arith.mulf %50, %50 : vector<128x128xf32>
    %53 = arith.addf %51, %52 : vector<128x128xf32>
    %cst_25 = arith.constant 0.444444448 : f32
    %54 = vector.broadcast %cst_25 : f32 to vector<128x128xf32>
    %55 = arith.mulf %53, %54 : vector<128x128xf32>
    %56 = math.log %47 : vector<128x128xf32>
    %cst_26 = arith.constant 2.000000e+00 : f32
    %57 = vector.broadcast %cst_26 : f32 to vector<128x128xf32>
    %58 = arith.mulf %57, %56 : vector<128x128xf32>
    %59 = arith.subf %55, %58 : vector<128x128xf32>
    %c0_27 = arith.constant 0 : index
    %c0_28 = arith.constant 0 : index
    %60 = vector.load %arg10[%c0_27, %c0_28] : memref<1x1xf32, #tpu.memory_space<vmem>>, vector<1x1xf32>
    %cst_29 = arith.constant 0.000000e+00 : f32
    %61 = vector.broadcast %cst_29 : f32 to vector<128x128xf32>
    %62 = arith.select %45, %59, %61 : vector<128x128xi1>, vector<128x128xf32>
    %cst_30 = arith.constant dense<0.000000e+00> : vector<128xf32>
    %63 = vector.multi_reduction <add>, %62, %cst_30 [1] : vector<128x128xf32> to vector<128xf32>
    %64 = vector.shape_cast %63 : vector<128xf32> to vector<128x1xf32>
    %cst_31 = arith.constant dense<0.000000e+00> : vector<1xf32>
    %65 = vector.multi_reduction <add>, %64, %cst_31 [0] : vector<128x1xf32> to vector<1xf32>
    %66 = vector.shape_cast %65 : vector<1xf32> to vector<1x1xf32>
    %67 = arith.addf %60, %66 : vector<1x1xf32>
    %c0_32 = arith.constant 0 : index
    %c0_33 = arith.constant 0 : index
    %68 = vector.load %arg10[%c0_32, %c0_33] : memref<1x1xf32, #tpu.memory_space<vmem>>, vector<1x1xf32>
    tpu.vector_store %arg10[%c0_32, %c0_33], %67 {strides = array<i32>} : memref<1x1xf32, #tpu.memory_space<vmem>>, vector<1x1xf32>,
    %c0_i32_34 = arith.constant 0 : i32
    %69 = arith.cmpi eq, %arg0, %c0_i32_34 : i32
    %70 = arith.extui %69 : i1 to i32
    %c0_i32_35 = arith.constant 0 : i32
    %71 = arith.cmpi ne, %70, %c0_i32_35 : i32
    scf.if %71 {
      %c128_i32_36 = arith.constant 128 : i32
      %72 = arith.muli %arg1, %c128_i32_36 : i32
      %73 = tpu.iota {dimensions = array<i32: 1>} : vector<1x128xi32>
      %74 = vector.broadcast %72 : i32 to vector<1x128xi32>
      %75 = arith.addi %74, %73 : vector<1x128xi32>
      %c32_i32_37 = arith.constant 32 : i32
      %76 = vector.broadcast %c32_i32_37 : i32 to vector<1x128xi32>
      %77 = arith.cmpi slt, %75, %76 : vector<1x128xi32>
      %cst_38 = arith.constant 1.000000e-30 : f32
      %78 = vector.broadcast %cst_38 : f32 to vector<1x128xf32>
      %79 = arith.maximumf %22, %78 : vector<1x128xf32>
      %c0_39 = arith.constant 0 : index
      %c0_40 = arith.constant 0 : index
      %80 = vector.load %arg5[%c0_39, %c0_40] : memref<1x128xf32, #tpu.memory_space<vmem>>, vector<1x128xf32>
      %cst_41 = arith.constant 5.000000e-02 : f32
      %81 = vector.broadcast %cst_41 : f32 to vector<1x128xf32>
      %82 = arith.subf %80, %81 : vector<1x128xf32>
      %83 = arith.mulf %79, %79 : vector<1x128xf32>
      %84 = arith.mulf %82, %82 : vector<1x128xf32>
      %85 = arith.addf %83, %84 : vector<1x128xf32>
      %cst_42 = arith.constant 0.444444448 : f32
      %86 = vector.broadcast %cst_42 : f32 to vector<1x128xf32>
      %87 = arith.mulf %85, %86 : vector<1x128xf32>
      %88 = math.log %79 : vector<1x128xf32>
      %cst_43 = arith.constant 2.000000e+00 : f32
      %89 = vector.broadcast %cst_43 : f32 to vector<1x128xf32>
      %90 = arith.mulf %89, %88 : vector<1x128xf32>
      %91 = arith.subf %87, %90 : vector<1x128xf32>
      %c0_44 = arith.constant 0 : index
      %c0_45 = arith.constant 0 : index
      %92 = vector.load %arg10[%c0_44, %c0_45] : memref<1x1xf32, #tpu.memory_space<vmem>>, vector<1x1xf32>
      %cst_46 = arith.constant 0.000000e+00 : f32
      %93 = vector.broadcast %cst_46 : f32 to vector<1x128xf32>
      %94 = arith.select %77, %91, %93 : vector<1x128xi1>, vector<1x128xf32>
      %cst_47 = arith.constant dense<0.000000e+00> : vector<1xf32>
      %95 = vector.multi_reduction <add>, %94, %cst_47 [1] : vector<1x128xf32> to vector<1xf32>
      %96 = vector.shape_cast %95 : vector<1xf32> to vector<1x1xf32>
      %cst_48 = arith.constant dense<0.000000e+00> : vector<1xf32>
      %97 = vector.multi_reduction <add>, %96, %cst_48 [0] : vector<1x1xf32> to vector<1xf32>
      %98 = vector.shape_cast %97 : vector<1xf32> to vector<1x1xf32>
      %99 = arith.addf %92, %98 : vector<1x1xf32>
      %c0_49 = arith.constant 0 : index
      %c0_50 = arith.constant 0 : index
      %100 = vector.load %arg10[%c0_49, %c0_50] : memref<1x1xf32, #tpu.memory_space<vmem>>, vector<1x1xf32>
      tpu.vector_store %arg10[%c0_49, %c0_50], %99 {strides = array<i32>} : memref<1x1xf32, #tpu.memory_space<vmem>>, vector<1x1xf32>,
    } else {
    }
    return
  }
  func.func @transform_0(%arg0: i32, %arg1: i32) -> (i32, i32) {
    %c0_i32 = arith.constant 0 : i32
    return %arg0, %arg1 : i32, i32
  }
  func.func @transform_1(%arg0: i32, %arg1: i32) -> (i32, i32) {
    %c0_i32 = arith.constant 0 : i32
    return %arg0, %arg1 : i32, i32
  }
  func.func @transform_2(%arg0: i32, %arg1: i32) -> (i32, i32) {
    %c0_i32 = arith.constant 0 : i32
    return %arg0, %arg1 : i32, i32
  }
  func.func @transform_3(%arg0: i32, %arg1: i32) -> (i32, i32) {
    %c0_i32 = arith.constant 0 : i32
    %c0_i32_0 = arith.constant 0 : i32
    return %c0_i32, %arg1 : i32, i32
  }
  func.func @transform_4(%arg0: i32, %arg1: i32) -> (i32, i32) {
    %c0_i32 = arith.constant 0 : i32
    %c0_i32_0 = arith.constant 0 : i32
    return %c0_i32, %arg1 : i32, i32
  }
  func.func @transform_5(%arg0: i32, %arg1: i32) -> (i32, i32) {
    %c0_i32 = arith.constant 0 : i32
    %c0_i32_0 = arith.constant 0 : i32
    return %c0_i32, %arg1 : i32, i32
  }
  func.func @transform_6(%arg0: i32, %arg1: i32) -> (i32, i32) {
    %c0_i32 = arith.constant 0 : i32
    return %arg0, %arg1 : i32, i32
  }
  func.func @transform_7(%arg0: i32, %arg1: i32) -> (i32, i32) {
    %c0_i32 = arith.constant 0 : i32
    %c0_i32_0 = arith.constant 0 : i32
    return %c0_i32, %arg1 : i32, i32
  }
  func.func @transform_8(%arg0: i32, %arg1: i32) -> (i32, i32) {
    %c0_i32 = arith.constant 0 : i32
    %c0_i32_0 = arith.constant 0 : i32
    %c0_i32_1 = arith.constant 0 : i32
    return %c0_i32, %c0_i32_0 : i32, i32
  }
}

</mosaic_0001>

<llo_original>
// kernel: tpu_custom_call.1
$region0: #{tpu_custom_call.1}
  #allocation0 [shape = 'u32[]', space=smem, size = 0x4, offset = 0x4, fixed_abs, tag = 'smem constant byte address 0x4 - core index']
  #allocation1 [shape = 'u32[144,128]{1,0:T(1,128)}', space=vmem, size = 0x12000, scoped, tag = 'internal scratch']
  %s0 = inlined_call_operand.hbm [shape: f32[128,128], index: 0, kind: input, shape index: {}]
  %s1 = inlined_call_operand.hbm [shape: f32[128,128], index: 1, kind: input, shape index: {}]
  %s2 = inlined_call_operand.hbm [shape: f32[128,128], index: 2, kind: input, shape index: {}]
  %s3 = inlined_call_operand.vmem [shape: f32[1,128], index: 3, kind: input, shape index: {}]
  %s4 = inlined_call_operand.vmem [shape: f32[1,128], index: 4, kind: input, shape index: {}]
  %s5 = inlined_call_operand.vmem [shape: f32[1,128], index: 5, kind: input, shape index: {}]
  %s6 = inlined_call_operand.hbm [shape: f32[128,128], index: 6, kind: output, shape index: {0}]
  %s7 = inlined_call_operand.hbm [shape: f32[1,128], index: 7, kind: output, shape index: {1}]
  %s8 = inlined_call_operand.hbm [shape: f32[1,1], index: 8, kind: output, shape index: {2}]
  %9 = xla_tuple %s6, %s7, %s8
  %s10 = sld [smem:[#allocation0]]
  $region70: #{tpu_custom_call.1} parent=0
    _
  %s12 = ssub.s32 1, %s10
  %s13 = scalar_select 0, %s12, %s10
  $region1: #{tpu_custom_call.1} parent=0
    #allocation2 [shape = 'u8[65536]{0}', space=vmem, size = 0x10000, scoped, tag = 'input window, operand 0, single buffered']
    #allocation3 [shape = 's32[1]{0}', space=sflag, size = 0x4, scoped, tag = 'scoped memory for tpu_custom_call.1']
    #allocation4 [shape = 's32[1]{0}', space=sflag, size = 0x4, scoped, tag = 'scoped memory for tpu_custom_call.1']
    #allocation5 [shape = 'u8[65536]{0}', space=vmem, size = 0x10000, scoped, tag = 'input window, operand 1, single buffered']
    #allocation6 [shape = 's32[1]{0}', space=sflag, size = 0x4, scoped, tag = 'scoped memory for tpu_custom_call.1']
    #allocation7 [shape = 'u8[65536]{0}', space=vmem, size = 0x10000, scoped, tag = 'input window, operand 2, single buffered']
    #allocation8 [shape = 'u8[65536]{0}', space=vmem, size = 0x10000, scoped, tag = 'output window, operand 0, single buffered']
    #allocation9 [shape = 'u8[512]{0}', space=vmem, size = 0x400, scoped, tag = 'output window, operand 1, single buffered']
    #allocation10 [shape = 's32[1]{0}', space=sflag, size = 0x4, scoped, tag = 'scoped memory for tpu_custom_call.1']
    #allocation11 [shape = 'u8[512]{0}', space=vmem, size = 0x400, scoped, tag = 'output window, operand 2, single buffered']
    %14 = vsyncpa [#allocation3], 0
    %15 = vsyncpa [#allocation6], 0
    %16 = vsyncpa [#allocation4], 0
    %17 = vsyncpa [#allocation10], 0
    // Predicated region
    $region2: #{tpu_custom_call.1} parent=1 // pred_check
      _
    $region3: #{tpu_custom_call.1} parent=1 // pred_check_branch
      %19 = sbr.rel (0) target = $region5
    $region4: #{tpu_custom_call.1} parent=1 // pred_region
      %s21 = ssub.s32 2048, 2048
      %22 = vsyncadd [#allocation3], %s21
      %s23 = sshll.u32 [#allocation2], 4
      %s24 = int_to_ptr.vmem [resolvable:$true] %s23
      %29 = dma.hbm_to_vmem [thread:$0]  %s0, 2048, %s24, [#allocation3], 128, 128, 8
    $region5: #{tpu_custom_call.1} parent=1 // pred_fallthru
      _
    // Predicated region
    $region6: #{tpu_custom_call.1} parent=1 // pred_check
      _
    $region7: #{tpu_custom_call.1} parent=1 // pred_check_branch
      %31 = sbr.rel (0) target = $region9
    $region8: #{tpu_custom_call.1} parent=1 // pred_region
      %s33 = ssub.s32 2048, 2048
      %34 = vsyncadd [#allocation6], %s33
      %s35 = sshll.u32 [#allocation5], 4
      %s36 = int_to_ptr.vmem [resolvable:$true] %s35
      %41 = dma.hbm_to_vmem [thread:$0]  %s1, 2048, %s36, [#allocation6], 128, 128, 8
    $region9: #{tpu_custom_call.1} parent=1 // pred_fallthru
      _
    // Predicated region
    $region10: #{tpu_custom_call.1} parent=1 // pred_check
      _
    $region11: #{tpu_custom_call.1} parent=1 // pred_check_branch
      %43 = sbr.rel (0) target = $region13
    $region12: #{tpu_custom_call.1} parent=1 // pred_region
      %s45 = ssub.s32 2048, 2048
      %46 = vsyncadd [#allocation6], %s45
      %s47 = sshll.u32 [#allocation7], 4
      %s48 = int_to_ptr.vmem [resolvable:$true] %s47
      %53 = dma.hbm_to_vmem [thread:$0]  %s2, 2048, %s48, [#allocation6], 128, 128, 8
    $region13: #{tpu_custom_call.1} parent=1 // pred_fallthru
      _
    // Predicated region
    $region14: #{tpu_custom_call.1} parent=1 // pred_check
      _
    $region15: #{tpu_custom_call.1} parent=1 // pred_check_branch
      %55 = sbr.rel (0) target = $region17
    $region16: #{tpu_custom_call.1} parent=1 // pred_region
      _
    $region17: #{tpu_custom_call.1} parent=1 // pred_fallthru
      _
    // Predicated region
    $region18: #{tpu_custom_call.1} parent=1 // pred_check
      _
    $region19: #{tpu_custom_call.1} parent=1 // pred_check_branch
      %57 = sbr.rel (0) target = $region21
    $region20: #{tpu_custom_call.1} parent=1 // pred_region
      _
    $region21: #{tpu_custom_call.1} parent=1 // pred_fallthru
      _
    // Predicated region
    $region22: #{tpu_custom_call.1} parent=1 // pred_check
      _
    $region23: #{tpu_custom_call.1} parent=1 // pred_check_branch
      %59 = sbr.rel (0) target = $region25
    $region24: #{tpu_custom_call.1} parent=1 // pred_region
      _
    $region25: #{tpu_custom_call.1} parent=1 // pred_fallthru
      _
    // Predicated region
    $region26: #{tpu_custom_call.1} parent=1 // pred_check
      _
    $region27: #{tpu_custom_call.1} parent=1 // pred_check_branch
      %61 = sbr.rel (0) target = $region29
    $region28: #{tpu_custom_call.1} parent=1 // pred_region
      %62 = dma.done [#allocation3], 2048
    $region29: #{tpu_custom_call.1} parent=1 // pred_fallthru
      _
    // Predicated region
    $region30: #{tpu_custom_call.1} parent=1 // pred_check
      _
    $region31: #{tpu_custom_call.1} parent=1 // pred_check_branch
      %64 = sbr.rel (0) target = $region33
    $region32: #{tpu_custom_call.1} parent=1 // pred_region
      %65 = dma.done [#allocation6], 2048
    $region33: #{tpu_custom_call.1} parent=1 // pred_fallthru
      _
    // Predicated region
    $region34: #{tpu_custom_call.1} parent=1 // pred_check
      _
    $region35: #{tpu_custom_call.1} parent=1 // pred_check_branch
      %67 = sbr.rel (0) target = $region37
    $region36: #{tpu_custom_call.1} parent=1 // pred_region
      %68 = dma.done [#allocation6], 2048
    $region37: #{tpu_custom_call.1} parent=1 // pred_fallthru
      _
    %v69 = vld [vmem:[#allocation5] sm:$0xff]
    %v70 = vld [vmem:[#allocation5 + $0x8] sm:$0xff]
    %v71 = vld [vmem:[#allocation5 + $0x10] sm:$0xff]
    %v72 = vld [vmem:[#allocation5 + $0x18] sm:$0xff]
    %v73 = vld [vmem:[#allocation5 + $0x20] sm:$0xff]
    %v74 = vld [vmem:[#allocation5 + $0x28] sm:$0xff]
    %v75 = vld [vmem:[#allocation5 + $0x30] sm:$0xff]
    %v76 = vld [vmem:[#allocation5 + $0x38] sm:$0xff]
    %v77 = vld [vmem:[#allocation5 + $0x40] sm:$0xff]
    %v78 = vld [vmem:[#allocation5 + $0x48] sm:$0xff]
    %v79 = vld [vmem:[#allocation5 + $0x50] sm:$0xff]
    %v80 = vld [vmem:[#allocation5 + $0x58] sm:$0xff]
    %v81 = vld [vmem:[#allocation5 + $0x60] sm:$0xff]
    %v82 = vld [vmem:[#allocation5 + $0x68] sm:$0xff]
    %v83 = vld [vmem:[#allocation5 + $0x70] sm:$0xff]
    %v84 = vld [vmem:[#allocation5 + $0x78] sm:$0xff]
    %v85 = vmax.f32 %v69, 0.0
    %v86 = vmax.f32 %v70, 0.0
    %v87 = vmax.f32 %v71, 0.0
    %v88 = vmax.f32 %v72, 0.0
    %v89 = vmax.f32 %v73, 0.0
    %v90 = vmax.f32 %v74, 0.0
    %v91 = vmax.f32 %v75, 0.0
    %v92 = vmax.f32 %v76, 0.0
    %v93 = vmax.f32 %v77, 0.0
    %v94 = vmax.f32 %v78, 0.0
    %v95 = vmax.f32 %v79, 0.0
    %v96 = vmax.f32 %v80, 0.0
    %v97 = vmax.f32 %v81, 0.0
    %v98 = vmax.f32 %v82, 0.0
    %v99 = vmax.f32 %v83, 0.0
    %v100 = vmax.f32 %v84, 0.0
    %v101 = vand.u32 2147483647, %v69
    %v102 = vand.u32 2147483647, %v70
    %v103 = vand.u32 2147483647, %v71
    %v104 = vand.u32 2147483647, %v72
    %v105 = vand.u32 2147483647, %v73
    %v106 = vand.u32 2147483647, %v74
    %v107 = vand.u32 2147483647, %v75
    %v108 = vand.u32 2147483647, %v76
    %v109 = vand.u32 2147483647, %v77
    %v110 = vand.u32 2147483647, %v78
    %v111 = vand.u32 2147483647, %v79
    %v112 = vand.u32 2147483647, %v80
    %v113 = vand.u32 2147483647, %v81
    %v114 = vand.u32 2147483647, %v82
    %v115 = vand.u32 2147483647, %v83
    %v116 = vand.u32 2147483647, %v84
    %v117 = vsub.f32 0.0, %v101
    %v118 = vsub.f32 0.0, %v102
    %v119 = vsub.f32 0.0, %v103
    %v120 = vsub.f32 0.0, %v104
    %v121 = vsub.f32 0.0, %v105
    %v122 = vsub.f32 0.0, %v106
    %v123 = vsub.f32 0.0, %v107
    %v124 = vsub.f32 0.0, %v108
    %v125 = vsub.f32 0.0, %v109
    %v126 = vsub.f32 0.0, %v110
    %v127 = vsub.f32 0.0, %v111
    %v128 = vsub.f32 0.0, %v112
    %v129 = vsub.f32 0.0, %v113
    %v130 = vsub.f32 0.0, %v114
    %v131 = vsub.f32 0.0, %v115
    %v132 = vsub.f32 0.0, %v116
    %v133 = vmul.f32 %v117, 1.442695
    %v134 = vpow.pop %v133
    %v135 = vmul.f32 %v118, 1.442695
    %v136 = vpow.pop %v135
    %v137 = vmul.f32 %v119, 1.442695
    %v138 = vpow.pop %v137
    %v139 = vmul.f32 %v120, 1.442695
    %v140 = vpow.pop %v139
    %v141 = vmul.f32 %v121, 1.442695
    %v142 = vpow.pop %v141
    %v143 = vmul.f32 %v122, 1.442695
    %v144 = vpow.pop %v143
    %v145 = vmul.f32 %v123, 1.442695
    %v146 = vpow.pop %v145
    %v147 = vmul.f32 %v124, 1.442695
    %v148 = vpow.pop %v147
    %v149 = vmul.f32 %v125, 1.442695
    %v150 = vpow.pop %v149
    %v151 = vmul.f32 %v126, 1.442695
    %v152 = vpow.pop %v151
    %v153 = vmul.f32 %v127, 1.442695
    %v154 = vpow.pop %v153
    %v155 = vmul.f32 %v128, 1.442695
    %v156 = vpow.pop %v155
    %v157 = vmul.f32 %v129, 1.442695
    %v158 = vpow.pop %v157
    %v159 = vmul.f32 %v130, 1.442695
    %v160 = vpow.pop %v159
    %v161 = vmul.f32 %v131, 1.442695
    %v162 = vpow.pop %v161
    %v163 = vmul.f32 %v132, 1.442695
    %v164 = vpow.pop %v163
    %v165 = vadd.f32 %v134, 1.0
    %v166 = vlog2.pop %v165
    %v167 = vmul.f32 %v166, 0.6931472
    %v168 = vmul.f32 -0.5, %v134
    %v169 = vadd.f32 %v168, 1.0
    %v170 = vmul.f32 %v169, %v134
    %v171 = vand.u32 2147483647, %v134
    %vm172 = vcmp.lt.f32.partialorder %v171, 0.0004427343
    %v173 = vsel %vm172, %v170, %v167
    %v174 = vadd.f32 %v136, 1.0
    %v175 = vlog2.pop %v174
    %v176 = vmul.f32 %v175, 0.6931472
    %v177 = vmul.f32 -0.5, %v136
    %v178 = vadd.f32 %v177, 1.0
    %v179 = vmul.f32 %v178, %v136
    %v180 = vand.u32 2147483647, %v136
    %vm181 = vcmp.lt.f32.partialorder %v180, 0.0004427343
    %v182 = vsel %vm181, %v179, %v176
    %v183 = vadd.f32 %v138, 1.0
    %v184 = vlog2.pop %v183
    %v185 = vmul.f32 %v184, 0.6931472
    %v186 = vmul.f32 -0.5, %v138
    %v187 = vadd.f32 %v186, 1.0
    %v188 = vmul.f32 %v187, %v138
    %v189 = vand.u32 2147483647, %v138
    %vm190 = vcmp.lt.f32.partialorder %v189, 0.0004427343
    %v191 = vsel %vm190, %v188, %v185
    %v192 = vadd.f32 %v140, 1.0
    %v193 = vlog2.pop %v192
    %v194 = vmul.f32 %v193, 0.6931472
    %v195 = vmul.f32 -0.5, %v140
    %v196 = vadd.f32 %v195, 1.0
    %v197 = vmul.f32 %v196, %v140
    %v198 = vand.u32 2147483647, %v140
    %vm199 = vcmp.lt.f32.partialorder %v198, 0.0004427343
    %v200 = vsel %vm199, %v197, %v194
    %v201 = vadd.f32 %v142, 1.0
    %v202 = vlog2.pop %v201
    %v203 = vmul.f32 %v202, 0.6931472
    %v204 = vmul.f32 -0.5, %v142
    %v205 = vadd.f32 %v204, 1.0
    %v206 = vmul.f32 %v205, %v142
    %v207 = vand.u32 2147483647, %v142
    %vm208 = vcmp.lt.f32.partialorder %v207, 0.0004427343
    %v209 = vsel %vm208, %v206, %v203
    %v210 = vadd.f32 %v144, 1.0
    %v211 = vlog2.pop %v210
    %v212 = vmul.f32 %v211, 0.6931472
    %v213 = vmul.f32 -0.5, %v144
    %v214 = vadd.f32 %v213, 1.0
    %v215 = vmul.f32 %v214, %v144
    %v216 = vand.u32 2147483647, %v144
    %vm217 = vcmp.lt.f32.partialorder %v216, 0.0004427343
    %v218 = vsel %vm217, %v215, %v212
    %v219 = vadd.f32 %v146, 1.0
    %v220 = vlog2.pop %v219
    %v221 = vmul.f32 %v220, 0.6931472
    %v222 = vmul.f32 -0.5, %v146
    %v223 = vadd.f32 %v222, 1.0
    %v224 = vmul.f32 %v223, %v146
    %v225 = vand.u32 2147483647, %v146
    %vm226 = vcmp.lt.f32.partialorder %v225, 0.0004427343
    %v227 = vsel %vm226, %v224, %v221
    %v228 = vadd.f32 %v148, 1.0
    %v229 = vlog2.pop %v228
    %v230 = vmul.f32 %v229, 0.6931472
    %v231 = vmul.f32 -0.5, %v148
    %v232 = vadd.f32 %v231, 1.0
    %v233 = vmul.f32 %v232, %v148
    %v234 = vand.u32 2147483647, %v148
    %vm235 = vcmp.lt.f32.partialorder %v234, 0.0004427343
    %v236 = vsel %vm235, %v233, %v230
    %v237 = vadd.f32 %v150, 1.0
    %v238 = vlog2.pop %v237
    %v239 = vmul.f32 %v238, 0.6931472
    %v240 = vmul.f32 -0.5, %v150
    %v241 = vadd.f32 %v240, 1.0
    %v242 = vmul.f32 %v241, %v150
    %v243 = vand.u32 2147483647, %v150
    %vm244 = vcmp.lt.f32.partialorder %v243, 0.0004427343
    %v245 = vsel %vm244, %v242, %v239
    %v246 = vadd.f32 %v152, 1.0
    %v247 = vlog2.pop %v246
    %v248 = vmul.f32 %v247, 0.6931472
    %v249 = vmul.f32 -0.5, %v152
    %v250 = vadd.f32 %v249, 1.0
    %v251 = vmul.f32 %v250, %v152
    %v252 = vand.u32 2147483647, %v152
    %vm253 = vcmp.lt.f32.partialorder %v252, 0.0004427343
    %v254 = vsel %vm253, %v251, %v248
    %v255 = vadd.f32 %v154, 1.0
    %v256 = vlog2.pop %v255
    %v257 = vmul.f32 %v256, 0.6931472
    %v258 = vmul.f32 -0.5, %v154
    %v259 = vadd.f32 %v258, 1.0
    %v260 = vmul.f32 %v259, %v154
    %v261 = vand.u32 2147483647, %v154
    %vm262 = vcmp.lt.f32.partialorder %v261, 0.0004427343
    %v263 = vsel %vm262, %v260, %v257
    %v264 = vadd.f32 %v156, 1.0
    %v265 = vlog2.pop %v264
    %v266 = vmul.f32 %v265, 0.6931472
    %v267 = vmul.f32 -0.5, %v156
    %v268 = vadd.f32 %v267, 1.0
    %v269 = vmul.f32 %v268, %v156
    %v270 = vand.u32 2147483647, %v156
    %vm271 = vcmp.lt.f32.partialorder %v270, 0.0004427343
    %v272 = vsel %vm271, %v269, %v266
    %v273 = vadd.f32 %v158, 1.0
    %v274 = vlog2.pop %v273
    %v275 = vmul.f32 %v274, 0.6931472
    %v276 = vmul.f32 -0.5, %v158
    %v277 = vadd.f32 %v276, 1.0
    %v278 = vmul.f32 %v277, %v158
    %v279 = vand.u32 2147483647, %v158
    %vm280 = vcmp.lt.f32.partialorder %v279, 0.0004427343
    %v281 = vsel %vm280, %v278, %v275
    %v282 = vadd.f32 %v160, 1.0
    %v283 = vlog2.pop %v282
    %v284 = vmul.f32 %v283, 0.6931472
    %v285 = vmul.f32 -0.5, %v160
    %v286 = vadd.f32 %v285, 1.0
    %v287 = vmul.f32 %v286, %v160
    %v288 = vand.u32 2147483647, %v160
    %vm289 = vcmp.lt.f32.partialorder %v288, 0.0004427343
    %v290 = vsel %vm289, %v287, %v284
    %v291 = vadd.f32 %v162, 1.0
    %v292 = vlog2.pop %v291
    %v293 = vmul.f32 %v292, 0.6931472
    %v294 = vmul.f32 -0.5, %v162
    %v295 = vadd.f32 %v294, 1.0
    %v296 = vmul.f32 %v295, %v162
    %v297 = vand.u32 2147483647, %v162
    %vm298 = vcmp.lt.f32.partialorder %v297, 0.0004427343
    %v299 = vsel %vm298, %v296, %v293
    %v300 = vadd.f32 %v164, 1.0
    %v301 = vlog2.pop %v300
    %v302 = vmul.f32 %v301, 0.6931472
    %v303 = vmul.f32 -0.5, %v164
    %v304 = vadd.f32 %v303, 1.0
    %v305 = vmul.f32 %v304, %v164
    %v306 = vand.u32 2147483647, %v164
    %vm307 = vcmp.lt.f32.partialorder %v306, 0.0004427343
    %v308 = vsel %vm307, %v305, %v302
    %v309 = vadd.f32 %v85, %v173
    %v310 = vadd.f32 %v86, %v182
    %v311 = vadd.f32 %v87, %v191
    %v312 = vadd.f32 %v88, %v200
    %v313 = vadd.f32 %v89, %v209
    %v314 = vadd.f32 %v90, %v218
    %v315 = vadd.f32 %v91, %v227
    %v316 = vadd.f32 %v92, %v236
    %v317 = vadd.f32 %v93, %v245
    %v318 = vadd.f32 %v94, %v254
    %v319 = vadd.f32 %v95, %v263
    %v320 = vadd.f32 %v96, %v272
    %v321 = vadd.f32 %v97, %v281
    %v322 = vadd.f32 %v98, %v290
    %v323 = vadd.f32 %v99, %v299
    %v324 = vadd.f32 %v100, %v308
    %v325 = vld [vmem:[#allocation2] sm:$0xff]
    %v326 = vld [vmem:[#allocation2 + $0x8] sm:$0xff]
    %v327 = vld [vmem:[#allocation2 + $0x10] sm:$0xff]
    %v328 = vld [vmem:[#allocation2 + $0x18] sm:$0xff]
    %v329 = vld [vmem:[#allocation2 + $0x20] sm:$0xff]
    %v330 = vld [vmem:[#allocation2 + $0x28] sm:$0xff]
    %v331 = vld [vmem:[#allocation2 + $0x30] sm:$0xff]
    %v332 = vld [vmem:[#allocation2 + $0x38] sm:$0xff]
    %v333 = vld [vmem:[#allocation2 + $0x40] sm:$0xff]
    %v334 = vld [vmem:[#allocation2 + $0x48] sm:$0xff]
    %v335 = vld [vmem:[#allocation2 + $0x50] sm:$0xff]
    %v336 = vld [vmem:[#allocation2 + $0x58] sm:$0xff]
    %v337 = vld [vmem:[#allocation2 + $0x60] sm:$0xff]
    %v338 = vld [vmem:[#allocation2 + $0x68] sm:$0xff]
    %v339 = vld [vmem:[#allocation2 + $0x70] sm:$0xff]
    %v340 = vld [vmem:[#allocation2 + $0x78] sm:$0xff]
    %v341 = vld [vmem:[#allocation7] sm:$0xff]
    %v342 = vld [vmem:[#allocation7 + $0x8] sm:$0xff]
    %v343 = vld [vmem:[#allocation7 + $0x10] sm:$0xff]
    %v344 = vld [vmem:[#allocation7 + $0x18] sm:$0xff]
    %v345 = vld [vmem:[#allocation7 + $0x20] sm:$0xff]
    %v346 = vld [vmem:[#allocation7 + $0x28] sm:$0xff]
    %v347 = vld [vmem:[#allocation7 + $0x30] sm:$0xff]
    %v348 = vld [vmem:[#allocation7 + $0x38] sm:$0xff]
    %v349 = vld [vmem:[#allocation7 + $0x40] sm:$0xff]
    %v350 = vld [vmem:[#allocation7 + $0x48] sm:$0xff]
    %v351 = vld [vmem:[#allocation7 + $0x50] sm:$0xff]
    %v352 = vld [vmem:[#allocation7 + $0x58] sm:$0xff]
    %v353 = vld [vmem:[#allocation7 + $0x60] sm:$0xff]
    %v354 = vld [vmem:[#allocation7 + $0x68] sm:$0xff]
    %v355 = vld [vmem:[#allocation7 + $0x70] sm:$0xff]
    %v356 = vld [vmem:[#allocation7 + $0x78] sm:$0xff]
    %v357 = vmul.f32 %v341, %v309
    %v358 = vmul.f32 %v342, %v310
    %v359 = vmul.f32 %v343, %v311
    %v360 = vmul.f32 %v344, %v312
    %v361 = vmul.f32 %v345, %v313
    %v362 = vmul.f32 %v346, %v314
    %v363 = vmul.f32 %v347, %v315
    %v364 = vmul.f32 %v348, %v316
    %v365 = vmul.f32 %v349, %v317
    %v366 = vmul.f32 %v350, %v318
    %v367 = vmul.f32 %v351, %v319
    %v368 = vmul.f32 %v352, %v320
    %v369 = vmul.f32 %v353, %v321
    %v370 = vmul.f32 %v354, %v322
    %v371 = vmul.f32 %v355, %v323
    %v372 = vmul.f32 %v356, %v324
    %v373 = vadd.f32 %v325, %v357
    %v374 = vadd.f32 %v326, %v358
    %v375 = vadd.f32 %v327, %v359
    %v376 = vadd.f32 %v328, %v360
    %v377 = vadd.f32 %v329, %v361
    %v378 = vadd.f32 %v330, %v362
    %v379 = vadd.f32 %v331, %v363
    %v380 = vadd.f32 %v332, %v364
    %v381 = vadd.f32 %v333, %v365
    %v382 = vadd.f32 %v334, %v366
    %v383 = vadd.f32 %v335, %v367
    %v384 = vadd.f32 %v336, %v368
    %v385 = vadd.f32 %v337, %v369
    %v386 = vadd.f32 %v338, %v370
    %v387 = vadd.f32 %v339, %v371
    %v388 = vadd.f32 %v340, %v372
    %389 = vst [vmem:[#allocation8] sm:$0xff] %v373
    %390 = vst [vmem:[#allocation8 + $0x8] sm:$0xff] %v374
    %391 = vst [vmem:[#allocation8 + $0x10] sm:$0xff] %v375
    %392 = vst [vmem:[#allocation8 + $0x18] sm:$0xff] %v376
    %393 = vst [vmem:[#allocation8 + $0x20] sm:$0xff] %v377
    %394 = vst [vmem:[#allocation8 + $0x28] sm:$0xff] %v378
    %395 = vst [vmem:[#allocation8 + $0x30] sm:$0xff] %v379
    %396 = vst [vmem:[#allocation8 + $0x38] sm:$0xff] %v380
    %397 = vst [vmem:[#allocation8 + $0x40] sm:$0xff] %v381
    %398 = vst [vmem:[#allocation8 + $0x48] sm:$0xff] %v382
    %399 = vst [vmem:[#allocation8 + $0x50] sm:$0xff] %v383
    %400 = vst [vmem:[#allocation8 + $0x58] sm:$0xff] %v384
    %401 = vst [vmem:[#allocation8 + $0x60] sm:$0xff] %v385
    %402 = vst [vmem:[#allocation8 + $0x68] sm:$0xff] %v386
    %403 = vst [vmem:[#allocation8 + $0x70] sm:$0xff] %v387
    %404 = vst [vmem:[#allocation8 + $0x78] sm:$0xff] %v388
    %v405 = vld [vmem:[%s4] sm:$0x1]
    %v406 = vmax.f32 %v405, 0.0
    %v407 = vand.u32 2147483647, %v405
    %v408 = vsub.f32 0.0, %v407
    %v409 = vmul.f32 %v408, 1.442695
    %v410 = vpow.pop %v409
    %v411 = vadd.f32 %v410, 1.0
    %v412 = vlog2.pop %v411
    %v413 = vmul.f32 %v412, 0.6931472
    %v414 = vmul.f32 -0.5, %v410
    %v415 = vadd.f32 %v414, 1.0
    %v416 = vmul.f32 %v415, %v410
    %v417 = vand.u32 2147483647, %v410
    %vm418 = vcmp.lt.f32.partialorder %v417, 0.0004427343
    %v419 = vsel %vm418, %v416, %v413
    %v420 = vadd.f32 %v406, %v419
    %v421 = vld [vmem:[%s3] sm:$0x1]
    %v422 = vld [vmem:[%s5] sm:$0x1]
    %v423 = vmul.f32 %v422, %v420
    %v424 = vadd.f32 %v421, %v423
    %425 = vst [vmem:[#allocation9] sm:$0x1] %v424
    %p426 = scmp.eq.s32.totalorder 0, 0
    %p427 = scmp.eq.s32.totalorder 0, 0
    %p428 = pnand %p426, %p427
    %p429 = pneg %p428
    // Predicated region
    $region38: #{tpu_custom_call.1} parent=1 // pred_check
      _
    $region39: #{tpu_custom_call.1} parent=1 // pred_check_branch
      %431 = sbr.rel (%p428) target = $region41
    $region40: #{tpu_custom_call.1} parent=1 // pred_region
      %vm432 = vcmask 0
      %433 = vst.msk [vmem:[#allocation11] sm:$0x1] %vm432, 0.0
    $region41: #{tpu_custom_call.1} parent=1 // pred_fallthru
      _
    %s434 = smul.u32 0, 128
    %v435 = vlaneseq
    %v436 = vshrl.u32 %v435, 7
    %v437 = vadd.s32 %v436, 8
    %v438 = vadd.s32 %v436, 16
    %v439 = vadd.s32 %v436, 24
    %v440 = vadd.s32 %v436, 32
    %v441 = vadd.s32 %v436, 40
    %v442 = vadd.s32 %v436, 48
    %v443 = vadd.s32 %v436, 56
    %v444 = vadd.s32 %v436, 64
    %v445 = vadd.s32 %v436, 72
    %v446 = vadd.s32 %v436, 80
    %v447 = vadd.s32 %v436, 88
    %v448 = vadd.s32 %v436, 96
    %v449 = vadd.s32 %v436, 104
    %v450 = vadd.s32 %v436, 112
    %v451 = vadd.s32 %v436, 120
    %v452 = vstv %s434
    %v453 = vadd.s32 %v452, %v436
    %v454 = vadd.s32 %v452, %v437
    %v455 = vadd.s32 %v452, %v438
    %v456 = vadd.s32 %v452, %v439
    %v457 = vadd.s32 %v452, %v440
    %v458 = vadd.s32 %v452, %v441
    %v459 = vadd.s32 %v452, %v442
    %v460 = vadd.s32 %v452, %v443
    %v461 = vadd.s32 %v452, %v444
    %v462 = vadd.s32 %v452, %v445
    %v463 = vadd.s32 %v452, %v446
    %v464 = vadd.s32 %v452, %v447
    %v465 = vadd.s32 %v452, %v448
    %v466 = vadd.s32 %v452, %v449
    %v467 = vadd.s32 %v452, %v450
    %v468 = vadd.s32 %v452, %v451
    %s469 = smul.u32 0, 128
    %v470 = vlaneseq
    %v471 = vand.u32 %v470, 127
    %v472 = vstv %s469
    %v473 = vadd.s32 %v472, %v471
    %vm474 = vcmp.lt.s32.totalorder %v453, 16
    %vm475 = vcmp.lt.s32.totalorder %v454, 16
    %vm476 = vcmp.lt.s32.totalorder %v455, 16
    %vm477 = vcmp.lt.s32.totalorder %v456, 16
    %vm478 = vcmp.lt.s32.totalorder %v457, 16
    %vm479 = vcmp.lt.s32.totalorder %v458, 16
    %vm480 = vcmp.lt.s32.totalorder %v459, 16
    %vm481 = vcmp.lt.s32.totalorder %v460, 16
    %vm482 = vcmp.lt.s32.totalorder %v461, 16
    %vm483 = vcmp.lt.s32.totalorder %v462, 16
    %vm484 = vcmp.lt.s32.totalorder %v463, 16
    %vm485 = vcmp.lt.s32.totalorder %v464, 16
    %vm486 = vcmp.lt.s32.totalorder %v465, 16
    %vm487 = vcmp.lt.s32.totalorder %v466, 16
    %vm488 = vcmp.lt.s32.totalorder %v467, 16
    %vm489 = vcmp.lt.s32.totalorder %v468, 16
    %vm490 = vcmp.lt.s32.totalorder %v473, 32
    %vm491 = vmand %vm474, %vm490
    %vm492 = vmand %vm475, %vm490
    %vm493 = vmand %vm476, %vm490
    %vm494 = vmand %vm477, %vm490
    %vm495 = vmand %vm478, %vm490
    %vm496 = vmand %vm479, %vm490
    %vm497 = vmand %vm480, %vm490
    %vm498 = vmand %vm481, %vm490
    %vm499 = vmand %vm482, %vm490
    %vm500 = vmand %vm483, %vm490
    %vm501 = vmand %vm484, %vm490
    %vm502 = vmand %vm485, %vm490
    %vm503 = vmand %vm486, %vm490
    %vm504 = vmand %vm487, %vm490
    %vm505 = vmand %vm488, %vm490
    %vm506 = vmand %vm489, %vm490
    %v507 = vmax.f32 %v309, 1e-30
    %v508 = vmax.f32 %v310, 1e-30
    %v509 = vmax.f32 %v311, 1e-30
    %v510 = vmax.f32 %v312, 1e-30
    %v511 = vmax.f32 %v313, 1e-30
    %v512 = vmax.f32 %v314, 1e-30
    %v513 = vmax.f32 %v315, 1e-30
    %v514 = vmax.f32 %v316, 1e-30
    %v515 = vmax.f32 %v317, 1e-30
    %v516 = vmax.f32 %v318, 1e-30
    %v517 = vmax.f32 %v319, 1e-30
    %v518 = vmax.f32 %v320, 1e-30
    %v519 = vmax.f32 %v321, 1e-30
    %v520 = vmax.f32 %v322, 1e-30
    %v521 = vmax.f32 %v323, 1e-30
    %v522 = vmax.f32 %v324, 1e-30
    %v523 = vld [vmem:[#allocation2] sm:$0xff]
    %v524 = vld [vmem:[#allocation2 + $0x8] sm:$0xff]
    %v525 = vld [vmem:[#allocation2 + $0x10] sm:$0xff]
    %v526 = vld [vmem:[#allocation2 + $0x18] sm:$0xff]
    %v527 = vld [vmem:[#allocation2 + $0x20] sm:$0xff]
    %v528 = vld [vmem:[#allocation2 + $0x28] sm:$0xff]
    %v529 = vld [vmem:[#allocation2 + $0x30] sm:$0xff]
    %v530 = vld [vmem:[#allocation2 + $0x38] sm:$0xff]
    %v531 = vld [vmem:[#allocation2 + $0x40] sm:$0xff]
    %v532 = vld [vmem:[#allocation2 + $0x48] sm:$0xff]
    %v533 = vld [vmem:[#allocation2 + $0x50] sm:$0xff]
    %v534 = vld [vmem:[#allocation2 + $0x58] sm:$0xff]
    %v535 = vld [vmem:[#allocation2 + $0x60] sm:$0xff]
    %v536 = vld [vmem:[#allocation2 + $0x68] sm:$0xff]
    %v537 = vld [vmem:[#allocation2 + $0x70] sm:$0xff]
    %v538 = vld [vmem:[#allocation2 + $0x78] sm:$0xff]
    %v539 = vsub.f32 %v523, 0.05
    %v540 = vsub.f32 %v524, 0.05
    %v541 = vsub.f32 %v525, 0.05
    %v542 = vsub.f32 %v526, 0.05
    %v543 = vsub.f32 %v527, 0.05
    %v544 = vsub.f32 %v528, 0.05
    %v545 = vsub.f32 %v529, 0.05
    %v546 = vsub.f32 %v530, 0.05
    %v547 = vsub.f32 %v531, 0.05
    %v548 = vsub.f32 %v532, 0.05
    %v549 = vsub.f32 %v533, 0.05
    %v550 = vsub.f32 %v534, 0.05
    %v551 = vsub.f32 %v535, 0.05
    %v552 = vsub.f32 %v536, 0.05
    %v553 = vsub.f32 %v537, 0.05
    %v554 = vsub.f32 %v538, 0.05
    %v555 = vmul.f32 %v507, %v507
    %v556 = vmul.f32 %v508, %v508
    %v557 = vmul.f32 %v509, %v509
    %v558 = vmul.f32 %v510, %v510
    %v559 = vmul.f32 %v511, %v511
    %v560 = vmul.f32 %v512, %v512
    %v561 = vmul.f32 %v513, %v513
    %v562 = vmul.f32 %v514, %v514
    %v563 = vmul.f32 %v515, %v515
    %v564 = vmul.f32 %v516, %v516
    %v565 = vmul.f32 %v517, %v517
    %v566 = vmul.f32 %v518, %v518
    %v567 = vmul.f32 %v519, %v519
    %v568 = vmul.f32 %v520, %v520
    %v569 = vmul.f32 %v521, %v521
    %v570 = vmul.f32 %v522, %v522
    %v571 = vmul.f32 %v539, %v539
    %v572 = vmul.f32 %v540, %v540
    %v573 = vmul.f32 %v541, %v541
    %v574 = vmul.f32 %v542, %v542
    %v575 = vmul.f32 %v543, %v543
    %v576 = vmul.f32 %v544, %v544
    %v577 = vmul.f32 %v545, %v545
    %v578 = vmul.f32 %v546, %v546
    %v579 = vmul.f32 %v547, %v547
    %v580 = vmul.f32 %v548, %v548
    %v581 = vmul.f32 %v549, %v549
    %v582 = vmul.f32 %v550, %v550
    %v583 = vmul.f32 %v551, %v551
    %v584 = vmul.f32 %v552, %v552
    %v585 = vmul.f32 %v553, %v553
    %v586 = vmul.f32 %v554, %v554
    %v587 = vadd.f32 %v555, %v571
    %v588 = vadd.f32 %v556, %v572
    %v589 = vadd.f32 %v557, %v573
    %v590 = vadd.f32 %v558, %v574
    %v591 = vadd.f32 %v559, %v575
    %v592 = vadd.f32 %v560, %v576
    %v593 = vadd.f32 %v561, %v577
    %v594 = vadd.f32 %v562, %v578
    %v595 = vadd.f32 %v563, %v579
    %v596 = vadd.f32 %v564, %v580
    %v597 = vadd.f32 %v565, %v581
    %v598 = vadd.f32 %v566, %v582
    %v599 = vadd.f32 %v567, %v583
    %v600 = vadd.f32 %v568, %v584
    %v601 = vadd.f32 %v569, %v585
    %v602 = vadd.f32 %v570, %v586
    %v603 = vmul.f32 %v587, 0.44444445
    %v604 = vmul.f32 %v588, 0.44444445
    %v605 = vmul.f32 %v589, 0.44444445
    %v606 = vmul.f32 %v590, 0.44444445
    %v607 = vmul.f32 %v591, 0.44444445
    %v608 = vmul.f32 %v592, 0.44444445
    %v609 = vmul.f32 %v593, 0.44444445
    %v610 = vmul.f32 %v594, 0.44444445
    %v611 = vmul.f32 %v595, 0.44444445
    %v612 = vmul.f32 %v596, 0.44444445
    %v613 = vmul.f32 %v597, 0.44444445
    %v614 = vmul.f32 %v598, 0.44444445
    %v615 = vmul.f32 %v599, 0.44444445
    %v616 = vmul.f32 %v600, 0.44444445
    %v617 = vmul.f32 %v601, 0.44444445
    %v618 = vmul.f32 %v602, 0.44444445
    %v619 = vlog2.pop %v507
    %v620 = vmul.f32 %v619, 0.6931472
    %v621 = vlog2.pop %v508
    %v622 = vmul.f32 %v621, 0.6931472
    %v623 = vlog2.pop %v509
    %v624 = vmul.f32 %v623, 0.6931472
    %v625 = vlog2.pop %v510
    %v626 = vmul.f32 %v625, 0.6931472
    %v627 = vlog2.pop %v511
    %v628 = vmul.f32 %v627, 0.6931472
    %v629 = vlog2.pop %v512
    %v630 = vmul.f32 %v629, 0.6931472
    %v631 = vlog2.pop %v513
    %v632 = vmul.f32 %v631, 0.6931472
    %v633 = vlog2.pop %v514
    %v634 = vmul.f32 %v633, 0.6931472
    %v635 = vlog2.pop %v515
    %v636 = vmul.f32 %v635, 0.6931472
    %v637 = vlog2.pop %v516
    %v638 = vmul.f32 %v637, 0.6931472
    %v639 = vlog2.pop %v517
    %v640 = vmul.f32 %v639, 0.6931472
    %v641 = vlog2.pop %v518
    %v642 = vmul.f32 %v641, 0.6931472
    %v643 = vlog2.pop %v519
    %v644 = vmul.f32 %v643, 0.6931472
    %v645 = vlog2.pop %v520
    %v646 = vmul.f32 %v645, 0.6931472
    %v647 = vlog2.pop %v521
    %v648 = vmul.f32 %v647, 0.6931472
    %v649 = vlog2.pop %v522
    %v650 = vmul.f32 %v649, 0.6931472
    %v651 = vmul.f32 %v620, 2.0
    %v652 = vmul.f32 %v622, 2.0
    %v653 = vmul.f32 %v624, 2.0
    %v654 = vmul.f32 %v626, 2.0
    %v655 = vmul.f32 %v628, 2.0
    %v656 = vmul.f32 %v630, 2.0
    %v657 = vmul.f32 %v632, 2.0
    %v658 = vmul.f32 %v634, 2.0
    %v659 = vmul.f32 %v636, 2.0
    %v660 = vmul.f32 %v638, 2.0
    %v661 = vmul.f32 %v640, 2.0
    %v662 = vmul.f32 %v642, 2.0
    %v663 = vmul.f32 %v644, 2.0
    %v664 = vmul.f32 %v646, 2.0
    %v665 = vmul.f32 %v648, 2.0
    %v666 = vmul.f32 %v650, 2.0
    %v667 = vsub.f32 %v603, %v651
    %v668 = vsub.f32 %v604, %v652
    %v669 = vsub.f32 %v605, %v653
    %v670 = vsub.f32 %v606, %v654
    %v671 = vsub.f32 %v607, %v655
    %v672 = vsub.f32 %v608, %v656
    %v673 = vsub.f32 %v609, %v657
    %v674 = vsub.f32 %v610, %v658
    %v675 = vsub.f32 %v611, %v659
    %v676 = vsub.f32 %v612, %v660
    %v677 = vsub.f32 %v613, %v661
    %v678 = vsub.f32 %v614, %v662
    %v679 = vsub.f32 %v615, %v663
    %v680 = vsub.f32 %v616, %v664
    %v681 = vsub.f32 %v617, %v665
    %v682 = vsub.f32 %v618, %v666
    %v683 = vld [vmem:[#allocation11] sm:$0x1]
    %v684 = vsel %vm491, %v667, 0.0
    %v685 = vsel %vm492, %v668, 0.0
    %v686 = vsel %vm493, %v669, 0.0
    %v687 = vsel %vm494, %v670, 0.0
    %v688 = vsel %vm495, %v671, 0.0
    %v689 = vsel %vm496, %v672, 0.0
    %v690 = vsel %vm497, %v673, 0.0
    %v691 = vsel %vm498, %v674, 0.0
    %v692 = vsel %vm499, %v675, 0.0
    %v693 = vsel %vm500, %v676, 0.0
    %v694 = vsel %vm501, %v677, 0.0
    %v695 = vsel %vm502, %v678, 0.0
    %v696 = vsel %vm503, %v679, 0.0
    %v697 = vsel %vm504, %v680, 0.0
    %v698 = vsel %vm505, %v681, 0.0
    %v699 = vsel %vm506, %v682, 0.0
    %700 = vadd.xlane.f32.xlu0 %v684
    %v701 = vpop.xlane.xlu0 %700
    %702 = vadd.xlane.f32.xlu0 %v685
    %v703 = vpop.xlane.xlu0 %702
    %704 = vadd.xlane.f32.xlu0 %v686
    %v705 = vpop.xlane.xlu0 %704
    %706 = vadd.xlane.f32.xlu0 %v687
    %v707 = vpop.xlane.xlu0 %706
    %708 = vadd.xlane.f32.xlu0 %v688
    %v709 = vpop.xlane.xlu0 %708
    %710 = vadd.xlane.f32.xlu0 %v689
    %v711 = vpop.xlane.xlu0 %710
    %712 = vadd.xlane.f32.xlu0 %v690
    %v713 = vpop.xlane.xlu0 %712
    %714 = vadd.xlane.f32.xlu0 %v691
    %v715 = vpop.xlane.xlu0 %714
    %716 = vadd.xlane.f32.xlu0 %v692
    %v717 = vpop.xlane.xlu0 %716
    %718 = vadd.xlane.f32.xlu0 %v693
    %v719 = vpop.xlane.xlu0 %718
    %720 = vadd.xlane.f32.xlu0 %v694
    %v721 = vpop.xlane.xlu0 %720
    %722 = vadd.xlane.f32.xlu0 %v695
    %v723 = vpop.xlane.xlu0 %722
    %724 = vadd.xlane.f32.xlu0 %v696
    %v725 = vpop.xlane.xlu0 %724
    %726 = vadd.xlane.f32.xlu0 %v697
    %v727 = vpop.xlane.xlu0 %726
    %728 = vadd.xlane.f32.xlu0 %v698
    %v729 = vpop.xlane.xlu0 %728
    %730 = vadd.xlane.f32.xlu0 %v699
    %v731 = vpop.xlane.xlu0 %730
    %v732 = vadd.f32 %v701, %v703
    %v733 = vadd.f32 %v732, %v705
    %v734 = vadd.f32 %v733, %v707
    %v735 = vadd.f32 %v734, %v709
    %v736 = vadd.f32 %v735, %v711
    %v737 = vadd.f32 %v736, %v713
    %v738 = vadd.f32 %v737, %v715
    %v739 = vadd.f32 %v738, %v717
    %v740 = vadd.f32 %v739, %v719
    %v741 = vadd.f32 %v740, %v721
    %v742 = vadd.f32 %v741, %v723
    %v743 = vadd.f32 %v742, %v725
    %v744 = vadd.f32 %v743, %v727
    %v745 = vadd.f32 %v744, %v729
    %v746 = vadd.f32 %v745, %v731
    %v747 = vrot.slane %v746, 4
    %v748 = vadd.f32 %v746, %v747
    %v749 = vrot.slane %v748, 2
    %v750 = vadd.f32 %v748, %v749
    %v751 = vrot.slane %v750, 1
    %v752 = vadd.f32 %v750, %v751
    %v753 = vadd.f32 %v683, %v752
    %vm754 = vcmask 0
    %755 = vst.msk [vmem:[#allocation11] sm:$0x1] %vm754, %v753
    // Predicated region
    $region42: #{tpu_custom_call.1} parent=1 // pred_check
      %p756 = pneg %p426
    $region43: #{tpu_custom_call.1} parent=1 // pred_check_branch
      %758 = sbr.rel (%p756) target = $region45
    $region44: #{tpu_custom_call.1} parent=1 // pred_region
      %v759 = vmax.f32 %v420, 1e-30
      %v760 = vld [vmem:[%s3] sm:$0x1]
      %v761 = vsub.f32 %v760, 0.05
      %v762 = vmul.f32 %v759, %v759
      %v763 = vmul.f32 %v761, %v761
      %v764 = vadd.f32 %v762, %v763
      %v765 = vmul.f32 %v764, 0.44444445
      %v766 = vlog2.pop %v759
      %v767 = vmul.f32 %v766, 0.6931472
      %v768 = vmul.f32 %v767, 2.0
      %v769 = vsub.f32 %v765, %v768
      %v770 = vld [vmem:[#allocation11] sm:$0x1]
      %v771 = vsel %vm490, %v769, 0.0
      %vm772 = vcmask 1040384
      %v773 = vsel %vm772, %v771, 0.0
      %774 = vadd.xlane.f32.xlu0 %v773
      %v775 = vpop.xlane.xlu0 %774
      %v776 = vadd.f32 %v775, 0.0
      %v777 = vadd.f32 %v770, %v776
      %778 = vst.msk [vmem:[#allocation11] sm:$0x1] %vm754, %v777
    $region45: #{tpu_custom_call.1} parent=1 // pred_fallthru
      _
    // Predicated region
    $region46: #{tpu_custom_call.1} parent=1 // pred_check
      _
    $region47: #{tpu_custom_call.1} parent=1 // pred_check_branch
      %780 = sbr.rel (0) target = $region49
    $region48: #{tpu_custom_call.1} parent=1 // pred_region
      %s782 = ssub.s32 2048, 2048
      %783 = vsyncadd [#allocation4], %s782
      %s784 = sshll.u32 [#allocation8], 4
      %s785 = int_to_ptr.vmem [resolvable:$true] %s784
      %790 = dma.vmem_to_hbm [thread:$0]  %s785, 2048, %s6, [#allocation4], 128, 128, 8
    $region49: #{tpu_custom_call.1} parent=1 // pred_fallthru
      _
    // Predicated region
    $region50: #{tpu_custom_call.1} parent=1 // pred_check
      _
    $region51: #{tpu_custom_call.1} parent=1 // pred_check_branch
      %792 = sbr.rel (0) target = $region53
    $region52: #{tpu_custom_call.1} parent=1 // pred_region
      %s794 = ssub.s32 16, 16
      %795 = vsyncadd [#allocation10], %s794
      %s797 = sshll.u32 [#allocation9], 4
      %s798 = int_to_ptr.vmem [resolvable:$true] %s797
      %800 = dma.vmem_to_hbm [thread:$0]  %s798, 16, %s7, [#allocation10]
    $region53: #{tpu_custom_call.1} parent=1 // pred_fallthru
      _
    // Predicated region
    $region54: #{tpu_custom_call.1} parent=1 // pred_check
      _
    $region55: #{tpu_custom_call.1} parent=1 // pred_check_branch
      %802 = sbr.rel (0) target = $region57
    $region56: #{tpu_custom_call.1} parent=1 // pred_region
      %s804 = ssub.s32 16, 16
      %805 = vsyncadd [#allocation10], %s804
      %s807 = sshll.u32 [#allocation11], 4
      %s808 = int_to_ptr.vmem [resolvable:$true] %s807
      %810 = dma.vmem_to_hbm [thread:$0]  %s808, 16, %s8, [#allocation10]
    $region57: #{tpu_custom_call.1} parent=1 // pred_fallthru
      _
    // Predicated region
    $region58: #{tpu_custom_call.1} parent=1 // pred_check
      _
    $region59: #{tpu_custom_call.1} parent=1 // pred_check_branch
      %812 = sbr.rel (0) target = $region61
    $region60: #{tpu_custom_call.1} parent=1 // pred_region
      %813 = dma.done [#allocation4], 2048
    $region61: #{tpu_custom_call.1} parent=1 // pred_fallthru
      _
    // Predicated region
    $region62: #{tpu_custom_call.1} parent=1 // pred_check
      _
    $region63: #{tpu_custom_call.1} parent=1 // pred_check_branch
      %815 = sbr.rel (0) target = $region65
    $region64: #{tpu_custom_call.1} parent=1 // pred_region
      %816 = dma.done [#allocation10], 16
    $region65: #{tpu_custom_call.1} parent=1 // pred_fallthru
      _
    // Predicated region
    $region66: #{tpu_custom_call.1} parent=1 // pred_check
      _
    $region67: #{tpu_custom_call.1} parent=1 // pred_check_branch
      %818 = sbr.rel (0) target = $region69
    $region68: #{tpu_custom_call.1} parent=1 // pred_region
      %819 = dma.done [#allocation10], 16
    $region69: #{tpu_custom_call.1} parent=1 // pred_fallthru
      _
    %820 = vsyncpa [#allocation3], 1
    %821 = vsyncpa [#allocation6], 1
    %822 = vsyncpa [#allocation4], 1
    %823 = vsyncpa [#allocation10], 1

</llo_original>
